<compile_context>
chip_gen: v6e
topology: v6e:2x2x1
jax: 0.10.0
libtpu: 0.0.40
codegen_flags: <defaults>
</compile_context>

<pallas_src>
import numpy as np
import jax
import jax.numpy as jnp
from jax.experimental import pallas as pl
from jax.experimental.pallas import tpu as pltpu


# ----------------------------- Pallas kernel --------------------------------
def _stage_kernel(wm2_ref,                          # SMEM (1,): wmix[2]
                  x0_ref, x1_ref, x2_ref,           # VMEM (c0,thw),(c1,thw),(C,thw)
                  w0_ref, b0_ref, w1_ref, b1_ref,   # folded conv(1x1)+BN(+wmix)
                  out_ref):                         # VMEM (C, thw)
    # branch 0: conv_x0 (1x1 conv -> BN -> ReLU) * wmix[0]  (scale folded in W/b)
    o0 = jnp.dot(w0_ref[...], x0_ref[...],
                 preferred_element_type=jnp.float32) + b0_ref[...]
    o0 = jnp.maximum(o0, 0.0)
    # branch 1: conv_x1 (1x1 conv -> BN -> ReLU) * wmix[1]  (scale folded in W/b)
    o1 = jnp.dot(w1_ref[...], x1_ref[...],
                 preferred_element_type=jnp.float32) + b1_ref[...]
    o1 = jnp.maximum(o1, 0.0)
    # branch 2: Identity * wmix[2]  (f32 epilogue; cast only at the final store)
    o2 = x2_ref[...].astype(jnp.float32) * wm2_ref[0]
    out_ref[...] = (o0 + o1 + o2).astype(out_ref.dtype)


# ------------------------------ resize helpers --------------------------------
def _bilinear_resize_nchw(x, out_h, out_w):
    """F.interpolate(mode='bilinear', align_corners=False) on NCHW (gather path)."""
    b, c, h, w = x.shape

    def idx(out_size, in_size):
        scale = in_size / out_size
        d = jnp.arange(out_size, dtype=jnp.float32)
        src = jnp.maximum((d + 0.5) * scale - 0.5, 0.0)
        i0 = jnp.minimum(jnp.floor(src).astype(jnp.int32), in_size - 1)
        i1 = jnp.minimum(i0 + 1, in_size - 1)
        frac = src - i0.astype(jnp.float32)
        return i0, i1, frac

    h0, h1, hf = idx(out_h, h)
    w0, w1, wf = idx(out_w, w)
    top = (x[:, :, h0, :] * (1.0 - hf)[None, None, :, None]
           + x[:, :, h1, :] * hf[None, None, :, None])
    out = (top[:, :, :, w0] * (1.0 - wf)[None, None, None, :]
           + top[:, :, :, w1] * wf[None, None, None, :])
    return out


def _bilinear_downsample_exact(x, f):
    """Bilinear (align_corners=False) downsample by integer factor f (2 or 4) when
    H % f == 0 and W % f == 0: the source fraction is a constant 0.5, so the result
    is the mean of a fixed 2x2 neighborhood fetched with cheap strided slices."""
    a = f // 2 - 1
    top = x[:, :, a::f, :] + x[:, :, a + 1::f, :]
    return 0.25 * (top[:, :, :, a::f] + top[:, :, :, a + 1::f])


def _downsample(x, f):
    _, _, h, w = x.shape
    if h % f == 0 and w % f == 0:
        return _bilinear_downsample_exact(x, f)
    # TODO(synk): non-divisible spatial sizes fall back to the gather-based resize.
    return _bilinear_resize_nchw(x, h // f, w // f)


# ------------------------------ params ---------------------------------------
def make_params(key, hidden_dim, D=0.2):
    """Deterministic synthetic params; BN folded into the 1x1 conv."""
    c0, c1 = hidden_dim // 4, hidden_dim // 2
    ks = jax.random.split(key, 8)

    def conv_bn(kw, kb, kg, kbe, cin):
        Wt = jax.random.normal(kw, (hidden_dim, cin), jnp.float32) * 0.1  # (out,in)
        bc = jax.random.normal(kb, (hidden_dim,), jnp.float32) * 0.05
        gamma = 1.0 + 0.1 * jax.random.normal(kg, (hidden_dim,), jnp.float32)
        beta = 0.05 * jax.random.normal(kbe, (hidden_dim,), jnp.float32)
        rmean = jnp.zeros((hidden_dim,), jnp.float32)
        rvar = jnp.ones((hidden_dim,), jnp.float32)
        # TODO(synk): BN folded with eval-mode running stats; training-mode batch
        # statistics are not reproduced.
        scale = gamma / jnp.sqrt(rvar + 1e-5)
        W_eff = (Wt * scale[:, None]).T               # (cin, hidden)
        b_eff = ((bc - rmean) * scale + beta)[None]   # (1, hidden)
        return W_eff, b_eff

    W0, b0 = conv_bn(ks[0], ks[1], ks[2], ks[3], c0)
    W1, b1 = conv_bn(ks[4], ks[5], ks[6], ks[7], c1)
    wmix = jnp.array([1.0 - D * 2, 1.0 - D * 1, 1.0], jnp.float32) / 2.0
    return dict(W0=W0, b0=b0, W1=W1, b1=b1, wmix=wmix)


# ------------------------------ tiling ----------------------------------------
def _pick_thw(batch, hw, c0, c1, C, in_isz, out_isz,
              vmem_budget=24 << 20, thw_max=2048, force_thw=None):
    """Largest spatial tile (multiple of 128, or full extent) whose double-buffered
    activation tiles + double-buffered resident weights fit the VMEM budget."""
    if force_thw is not None:
        return int(force_thw)
    per_col = 2 * ((c0 + c1 + C) * in_isz + C * out_isz)      # 2 bufs per tile
    w_bytes = 2 * (C * (c0 + c1) * in_isz + 2 * C * 4)        # resident W/b, 2 bufs
    avail = max(vmem_budget - w_bytes, 4 << 20)
    thw = min(thw_max, avail // per_col)
    if hw <= thw:
        return int(hw)                                        # full spatial extent
    thw = max(128, (thw // 128) * 128)
    # Keep a few grid steps so megacore (v7x: 2 TCs) / pipelining have work.
    while thw > 512 and batch * (-(-hw // thw)) < 4:
        thw = max(512, ((thw // 2) // 128) * 128)
    return int(thw)


# ------------------------------ wrapper ---------------------------------------
def stage_learning_embedding(x_list, params, *, compute_dtype=jnp.float32,
                             thw_max=2048, vmem_budget=24 << 20, force_thw=None):
    x0, x1, x2 = x_list
    b, C, h2, w2 = x2.shape

    # bilinear /4 and /2 downsample (align_corners=False) via strided slices.
    xi0 = _downsample(x0, 4)
    xi1 = _downsample(x1, 2)
    c0, c1 = xi0.shape[1], xi1.shape[1]
    hw = h2 * w2

    # Fold learnable stage weights wmix[0], wmix[1] into the BN-folded 1x1 convs:
    # relu(a*y) == a*relu(y) for a > 0 (true for this module's init [0.3,0.4,0.5]).
    # TODO(synk): fall back to in-kernel scaling if wmix[0]/wmix[1] can train negative.
    wm = params["wmix"].astype(jnp.float32)
    W0t = (params["W0"] * wm[0]).T.astype(compute_dtype)            # (C, c0)
    W1t = (params["W1"] * wm[1]).T.astype(compute_dtype)            # (C, c1)
    b0c = (params["b0"][0] * wm[0]).reshape(C, 1).astype(jnp.float32)
    b1c = (params["b1"][0] * wm[1]).reshape(C, 1).astype(jnp.float32)
    wm2 = wm[2:3]                                                   # (1,) prefetch

    # NCHW-native: (B, Cin, H*W) is a free reshape; no transposes, no padding of
    # the big tensors.
    f0 = xi0.reshape(b, c0, hw).astype(compute_dtype)
    f1 = xi1.reshape(b, c1, hw).astype(compute_dtype)
    f2 = x2.reshape(b, C, hw).astype(compute_dtype)

    in_isz = jnp.dtype(compute_dtype).itemsize
    out_isz = in_isz                                                # out follows compute_dtype
    thw = _pick_thw(b, hw, c0, c1, C, in_isz, out_isz,
                    vmem_budget=vmem_budget, thw_max=thw_max, force_thw=force_thw)
    n_t = -(-hw // thw)                                             # ragged tail masked

    # VMEM limit from the real need (tiles x 2 buffers + resident weights + margin),
    # capped below v7x's 64 MiB per-TC VMEM.
    tile_bytes = 2 * thw * ((c0 + c1 + C) * in_isz + C * out_isz)
    w_bytes = 2 * (C * (c0 + c1) * in_isz + 2 * C * 4)
    vmem_limit = int(min(56 << 20,
                         max(32 << 20, tile_bytes + tile_bytes // 2 + w_bytes + (2 << 20))))

    out = pl.pallas_call(
        _stage_kernel,
        out_shape=jax.ShapeDtypeStruct((b, C, hw), compute_dtype),
        grid_spec=pltpu.PrefetchScalarGridSpec(
            num_scalar_prefetch=1,                                  # wmix[2] -> SMEM
            grid=(b, n_t),
            in_specs=[
                pl.BlockSpec((None, c0, thw), lambda bi, j, wm2: (bi, 0, j)),
                pl.BlockSpec((None, c1, thw), lambda bi, j, wm2: (bi, 0, j)),
                pl.BlockSpec((None, C, thw), lambda bi, j, wm2: (bi, 0, j)),
                pl.BlockSpec((C, c0), lambda bi, j, wm2: (0, 0)),   # resident
                pl.BlockSpec((C, 1), lambda bi, j, wm2: (0, 0)),    # resident
                pl.BlockSpec((C, c1), lambda bi, j, wm2: (0, 0)),   # resident
                pl.BlockSpec((C, 1), lambda bi, j, wm2: (0, 0)),    # resident
            ],
            out_specs=pl.BlockSpec((None, C, thw), lambda bi, j, wm2: (bi, 0, j)),
        ),
        compiler_params=pltpu.CompilerParams(
            dimension_semantics=("parallel", "parallel"),
            vmem_limit_bytes=vmem_limit),
    )(wm2, f0, f1, f2, W0t, b0c, W1t, b1c)

    return out.reshape(b, C, h2, w2)                                # still NCHW, free


# ------------------------------ reference ------------------------------------
def reference(x_list, params):
    x0, x1, x2 = x_list
    _, _, h0, w0 = x0.shape
    _, _, h1, w1 = x1.shape
    xi0 = _bilinear_resize_nchw(x0, h0 // 4, w0 // 4)
    xi1 = _bilinear_resize_nchw(x1, h1 // 2, w1 // 2)

    def branch(xi, W, bvec):
        y = jnp.einsum('bchw,cd->bdhw', xi, W) + bvec[0][None, :, None, None]
        return jnp.maximum(y, 0.0)

    o0 = branch(xi0, params["W0"], params["b0"])
    o1 = branch(xi1, params["W1"], params["b1"])
    wm = params["wmix"]
    return o0 * wm[0] + o1 * wm[1] + x2 * wm[2]


if __name__ == "__main__":
    hidden = 32
    b, h2, w2 = 2, 4, 4
    key = jax.random.PRNGKey(0)
    k0, k1, k2, kp, k3, k4, k5 = jax.random.split(key, 7)
    # feature pyramid: x0 at 4x, x1 at 2x the resolution of x2
    x0 = jax.random.normal(k0, (b, hidden // 4, 4 * h2, 4 * w2), jnp.float32)
    x1 = jax.random.normal(k1, (b, hidden // 2, 2 * h2, 2 * w2), jnp.float32)
    x2 = jax.random.normal(k2, (b, hidden, h2, w2), jnp.float32)

    params = make_params(kp, hidden, D=0.2)
    ref = reference([x0, x1, x2], params)

    # f32 data path: tight check
    out = stage_learning_embedding([x0, x1, x2], params)
    out = jax.block_until_ready(out)
    np.testing.assert_allclose(np.asarray(out), np.asarray(ref),
                               rtol=1e-5, atol=1e-5)

    # bf16 data path (HBM-bound; bf16 in, bf16 out, f32 accumulation): looser check
    out_bf16 = stage_learning_embedding([x0, x1, x2], params,
                                        compute_dtype=jnp.bfloat16)
    out_bf16 = jax.block_until_ready(out_bf16)
    np.testing.assert_allclose(np.asarray(out_bf16).astype(np.float32),
                               np.asarray(ref), rtol=3e-2, atol=3e-2)

    # ragged spatial tiling (hw % thw != 0): exercises Pallas boundary masking
    hr, wr = 12, 12
    x0r = jax.random.normal(k3, (b, hidden // 4, 4 * hr, 4 * wr), jnp.float32)
    x1r = jax.random.normal(k4, (b, hidden // 2, 2 * hr, 2 * wr), jnp.float32)
    x2r = jax.random.normal(k5, (b, hidden, hr, wr), jnp.float32)
    ref_r = reference([x0r, x1r, x2r], params)
    out_r = stage_learning_embedding([x0r, x1r, x2r], params, force_thw=128)
    out_r = jax.block_until_ready(out_r)
    np.testing.assert_allclose(np.asarray(out_r), np.asarray(ref_r),
                               rtol=1e-5, atol=1e-5)

    print("KERNEL_OK")
</pallas_src>

<mosaic_0001>
module attributes {stable_mosaic.version = 11 : i64} {
  func.func @_stage_kernel(%arg0: i32, %arg1: i32, %arg2: memref<1xf32, #tpu.memory_space<smem>>, %arg3: memref<1x8x16xf32, #tpu.memory_space<vmem>>, %arg4: memref<1x16x16xf32, #tpu.memory_space<vmem>>, %arg5: memref<1x32x16xf32, #tpu.memory_space<vmem>>, %arg6: memref<32x8xf32, #tpu.memory_space<vmem>>, %arg7: memref<32x1xf32, #tpu.memory_space<vmem>>, %arg8: memref<32x16xf32, #tpu.memory_space<vmem>>, %arg9: memref<32x1xf32, #tpu.memory_space<vmem>>, %arg10: memref<1x32x16xf32, #tpu.memory_space<vmem>>) attributes {dimension_semantics = [#tpu.dimension_semantics<parallel>, #tpu.dimension_semantics<parallel>], iteration_bounds = array<i64: 2, 1>, scalar_prefetch = 1 : i64, scratch_operands = 0 : i64, tpu.core_type = #tpu.core_type<tc>, window_params = [{transform_indices = @transform_0, window_bounds = array<i64: 1, 8, 16>}, {transform_indices = @transform_1, window_bounds = array<i64: 1, 16, 16>}, {transform_indices = @transform_2, window_bounds = array<i64: 1, 32, 16>}, {pipeline_mode = #tpu.pipeline_mode<synchronous>, transform_indices = @transform_3, window_bounds = array<i64: 32, 8>}, {pipeline_mode = #tpu.pipeline_mode<synchronous>, transform_indices = @transform_4, window_bounds = array<i64: 32, 1>}, {pipeline_mode = #tpu.pipeline_mode<synchronous>, transform_indices = @transform_5, window_bounds = array<i64: 32, 16>}, {pipeline_mode = #tpu.pipeline_mode<synchronous>, transform_indices = @transform_6, window_bounds = array<i64: 32, 1>}, {transform_indices = @transform_7, window_bounds = array<i64: 1, 32, 16>}]} {
    %c0 = arith.constant 0 : index
    %c0_0 = arith.constant 0 : index
    %0 = vector.load %arg6[%c0, %c0_0] : memref<32x8xf32, #tpu.memory_space<vmem>>, vector<32x8xf32>
    %c0_1 = arith.constant 0 : index
    %c0_2 = arith.constant 0 : index
    %c0_3 = arith.constant 0 : index
    %1 = vector.load %arg3[%c0_1, %c0_2, %c0_3] : memref<1x8x16xf32, #tpu.memory_space<vmem>>, vector<1x8x16xf32>
    %2 = vector.shape_cast %1 : vector<1x8x16xf32> to vector<8x16xf32>
    %cst = arith.constant dense<0.000000e+00> : vector<32x16xf32>
    %3 = tpu.matmul %0, %2, %cst {dimension_numbers = #tpu.dot_dimension_numbers<[1], [0], [0], [1], [0, 0, 1, 1], [], []>} : vector<32x8xf32>, vector<8x16xf32>, vector<32x16xf32> -> vector<32x16xf32>
    %c0_4 = arith.constant 0 : index
    %c0_5 = arith.constant 0 : index
    %4 = vector.load %arg7[%c0_4, %c0_5] : memref<32x1xf32, #tpu.memory_space<vmem>>, vector<32x1xf32>
    %5 = vector.broadcast %4 : vector<32x1xf32> to vector<32x16xf32>
    %6 = arith.addf %3, %5 : vector<32x16xf32>
    %cst_6 = arith.constant 0.000000e+00 : f32
    %7 = vector.broadcast %cst_6 : f32 to vector<32x16xf32>
    %8 = arith.maximumf %6, %7 : vector<32x16xf32>
    %c0_7 = arith.constant 0 : index
    %c0_8 = arith.constant 0 : index
    %9 = vector.load %arg8[%c0_7, %c0_8] : memref<32x16xf32, #tpu.memory_space<vmem>>, vector<32x16xf32>
    %c0_9 = arith.constant 0 : index
    %c0_10 = arith.constant 0 : index
    %c0_11 = arith.constant 0 : index
    %10 = vector.load %arg4[%c0_9, %c0_10, %c0_11] : memref<1x16x16xf32, #tpu.memory_space<vmem>>, vector<1x16x16xf32>
    %11 = vector.shape_cast %10 : vector<1x16x16xf32> to vector<16x16xf32>
    %cst_12 = arith.constant dense<0.000000e+00> : vector<32x16xf32>
    %12 = tpu.matmul %9, %11, %cst_12 {dimension_numbers = #tpu.dot_dimension_numbers<[1], [0], [0], [1], [0, 0, 1, 1], [], []>} : vector<32x16xf32>, vector<16x16xf32>, vector<32x16xf32> -> vector<32x16xf32>
    %c0_13 = arith.constant 0 : index
    %c0_14 = arith.constant 0 : index
    %13 = vector.load %arg9[%c0_13, %c0_14] : memref<32x1xf32, #tpu.memory_space<vmem>>, vector<32x1xf32>
    %14 = vector.broadcast %13 : vector<32x1xf32> to vector<32x16xf32>
    %15 = arith.addf %12, %14 : vector<32x16xf32>
    %cst_15 = arith.constant 0.000000e+00 : f32
    %16 = vector.broadcast %cst_15 : f32 to vector<32x16xf32>
    %17 = arith.maximumf %15, %16 : vector<32x16xf32>
    %c0_16 = arith.constant 0 : index
    %c0_17 = arith.constant 0 : index
    %c0_18 = arith.constant 0 : index
    %18 = vector.load %arg5[%c0_16, %c0_17, %c0_18] : memref<1x32x16xf32, #tpu.memory_space<vmem>>, vector<1x32x16xf32>
    %19 = vector.shape_cast %18 : vector<1x32x16xf32> to vector<32x16xf32>
    %c0_19 = arith.constant 0 : index
    %20 = memref.load %arg2[%c0_19] : memref<1xf32, #tpu.memory_space<smem>>
    %21 = vector.broadcast %20 : f32 to vector<32x16xf32>
    %22 = arith.mulf %19, %21 : vector<32x16xf32>
    %23 = arith.addf %8, %17 : vector<32x16xf32>
    %24 = arith.addf %23, %22 : vector<32x16xf32>
    %c0_20 = arith.constant 0 : index
    %c0_21 = arith.constant 0 : index
    %c0_22 = arith.constant 0 : index
    %25 = vector.load %arg10[%c0_20, %c0_21, %c0_22] : memref<1x32x16xf32, #tpu.memory_space<vmem>>, vector<1x32x16xf32>
    %26 = vector.shape_cast %25 : vector<1x32x16xf32> to vector<32x16xf32>
    %27 = vector.shape_cast %24 : vector<32x16xf32> to vector<1x32x16xf32>
    tpu.vector_store %arg10[%c0_20, %c0_21, %c0_22], %27 {strides = array<i32>} : memref<1x32x16xf32, #tpu.memory_space<vmem>>, vector<1x32x16xf32>,
    return
  }
  func.func @transform_0(%arg0: i32, %arg1: i32, %arg2: memref<1xf32, #tpu.memory_space<smem>>) -> (i32, i32, i32) {
    %c0_i32 = arith.constant 0 : i32
    %c0_i32_0 = arith.constant 0 : i32
    return %arg0, %c0_i32, %arg1 : i32, i32, i32
  }
  func.func @transform_1(%arg0: i32, %arg1: i32, %arg2: memref<1xf32, #tpu.memory_space<smem>>) -> (i32, i32, i32) {
    %c0_i32 = arith.constant 0 : i32
    %c0_i32_0 = arith.constant 0 : i32
    return %arg0, %c0_i32, %arg1 : i32, i32, i32
  }
  func.func @transform_2(%arg0: i32, %arg1: i32, %arg2: memref<1xf32, #tpu.memory_space<smem>>) -> (i32, i32, i32) {
    %c0_i32 = arith.constant 0 : i32
    %c0_i32_0 = arith.constant 0 : i32
    return %arg0, %c0_i32, %arg1 : i32, i32, i32
  }
  func.func @transform_3(%arg0: i32, %arg1: i32, %arg2: memref<1xf32, #tpu.memory_space<smem>>) -> (i32, i32) {
    %c0_i32 = arith.constant 0 : i32
    %c0_i32_0 = arith.constant 0 : i32
    %c0_i32_1 = arith.constant 0 : i32
    return %c0_i32, %c0_i32_0 : i32, i32
  }
  func.func @transform_4(%arg0: i32, %arg1: i32, %arg2: memref<1xf32, #tpu.memory_space<smem>>) -> (i32, i32) {
    %c0_i32 = arith.constant 0 : i32
    %c0_i32_0 = arith.constant 0 : i32
    %c0_i32_1 = arith.constant 0 : i32
    return %c0_i32, %c0_i32_0 : i32, i32
  }
  func.func @transform_5(%arg0: i32, %arg1: i32, %arg2: memref<1xf32, #tpu.memory_space<smem>>) -> (i32, i32) {
    %c0_i32 = arith.constant 0 : i32
    %c0_i32_0 = arith.constant 0 : i32
    %c0_i32_1 = arith.constant 0 : i32
    return %c0_i32, %c0_i32_0 : i32, i32
  }
  func.func @transform_6(%arg0: i32, %arg1: i32, %arg2: memref<1xf32, #tpu.memory_space<smem>>) -> (i32, i32) {
    %c0_i32 = arith.constant 0 : i32
    %c0_i32_0 = arith.constant 0 : i32
    %c0_i32_1 = arith.constant 0 : i32
    return %c0_i32, %c0_i32_0 : i32, i32
  }
  func.func @transform_7(%arg0: i32, %arg1: i32, %arg2: memref<1xf32, #tpu.memory_space<smem>>) -> (i32, i32, i32) {
    %c0_i32 = arith.constant 0 : i32
    %c0_i32_0 = arith.constant 0 : i32
    return %arg0, %c0_i32, %arg1 : i32, i32, i32
  }
}

</mosaic_0001>

<llo_original>
// kernel: tpu_custom_call.1
$region0: #{tpu_custom_call.1}
  #allocation0 [shape = 'u32[]', space=smem, size = 0x4, offset = 0x4, fixed_abs, tag = 'smem constant byte address 0x4 - core index']
  #allocation1 [shape = 'u32[144,128]{1,0:T(1,128)}', space=vmem, size = 0x12000, scoped, tag = 'internal scratch']
  #allocation2 [shape = 's32[1]{0}', space=sflag, size = 0x4, scoped, tag = 'scoped memory for tpu_custom_call.1']
  #allocation3 [shape = 'f32[1]{0:T(128)S(6)}', space=smem, size = 0x200, scoped, tag = 'prefetched SMEM operand 0']
  %s0 = inlined_call_operand.<no memory space> [shape: f32[1], index: 0, kind: input, shape index: {}]
  %s1 = inlined_call_operand.vmem [shape: f32[2,8,16], index: 1, kind: input, shape index: {}]
  %s2 = inlined_call_operand.vmem [shape: f32[2,16,16], index: 2, kind: input, shape index: {}]
  %s3 = inlined_call_operand.vmem [shape: f32[2,32,16], index: 3, kind: input, shape index: {}]
  %s4 = inlined_call_operand.vmem [shape: f32[32,8], index: 4, kind: input, shape index: {}]
  %s5 = inlined_call_operand.vmem [shape: f32[32,1], index: 5, kind: input, shape index: {}]
  %s6 = inlined_call_operand.vmem [shape: f32[32,16], index: 6, kind: input, shape index: {}]
  %s7 = inlined_call_operand.vmem [shape: f32[32,1], index: 7, kind: input, shape index: {}]
  %s8 = inlined_call_operand.vmem [shape: f32[2,32,16], index: 8, kind: output, shape index: {}]
  %s9 = sld [smem:[#allocation0]]
  $region61: #{tpu_custom_call.1} parent=0
    _
  %s11 = ssub.s32 1, %s9
  %s12 = scalar_select 0, %s11, %s9
  %13 = sst [smem:[#allocation3]] %s0
  loop: start=0, step=1, limit=4
  $region2: #{tpu_custom_call.1} parent=0 // loop_pre_header
    _
  $region3: #{tpu_custom_call.1} parent=0 // loop_header
    %s15 = sphi 0, %s19
    %p16 = scmp.ge.s32.totalorder %s15, 4
    %s22 = sphi 0, %s34
    %s23 = sphi 0, %s30
    %s24 = sphi 0, %s22
    %s25 = sphi 0, %s23
    %s26 = sphi 0, %s24
    %s27 = sphi 0, %s25
    %s39 = sphi 0, %s41
    %s42 = sphi 0, %s39
    %s43 = sphi 0, %s42
    %s59 = sphi 0, %s43
    %s67 = sphi 0, %s69
    %s70 = sphi 0, %s67
    %s71 = sphi 0, %s70
    %s87 = sphi 0, %s71
    %s95 = sphi 0, %s97
    %s98 = sphi 0, %s95
    %s99 = sphi 0, %s98
    %s115 = sphi 0, %s99
    %s119 = sphi 0, %s119
    %s121 = sphi 0, %s119
    %s122 = sphi 0, %s121
    %s136 = sphi 0, %s122
    %s140 = sphi 0, %s140
    %s142 = sphi 0, %s140
    %s143 = sphi 0, %s142
    %s157 = sphi 0, %s143
    %s161 = sphi 0, %s161
    %s163 = sphi 0, %s161
    %s164 = sphi 0, %s163
    %s178 = sphi 0, %s164
    %s182 = sphi 0, %s182
    %s184 = sphi 0, %s182
    %s185 = sphi 0, %s184
    %s199 = sphi 0, %s185
    %s207 = sphi 0, %s209
    %s210 = sphi 0, %s207
    %s211 = sphi 0, %s210
    %s227 = sphi 0, %s211
  $region4: #{tpu_custom_call.1} parent=0 // loop_header_branch
    %18 = sbr.rel (%p16) target = $region8
  $region5: #{tpu_custom_call.1} parent=0 // loop_body
    %s20 = ssub.s32 %s15, 1
    %s21 = ssub.s32 %s15, 2
    %s28 = sadd.s32 1, %s23
    %p29 = scmp.ge.s32.totalorder %s28, 1
    %s30 = scalar_select %p29, 0, %s28
    %s31 = sadd.s32 1, %s22
    %s32 = scalar_select %p29, %s31, %s22
    %p33 = scmp.ge.s32.totalorder %s32, 2
    %s34 = scalar_select %p33, 0, %s32
    %s35 = ssub.s32 %s22, %s34
    %s36 = ssub.s32 %s23, %s30
    %s37 = sor.u32 %s35, %s36
    %p38 = scmp.eq.s32.totalorder %s37, 0
    %s40 = sadd.s32 %s39, 1
    %s41 = scalar_select %p38, %s39, %s40
    %p44 = pneg %p38
    %p45 = scmp.eq.s32.totalorder %s15, 1
    %p46 = por %p44, %p45
    %p47 = scmp.ne.s32.totalorder %s39, %s42
    %p48 = scmp.eq.s32.totalorder %s15, 0
    %p49 = por %p47, %p48
    %p50 = scmp.ne.s32.totalorder %s39, %s42
    %p51 = scmp.eq.s32.totalorder %s20, 1
    %p52 = por %p50, %p51
    %p53 = scmp.ne.s32.totalorder %s42, %s43
    %p54 = scmp.eq.s32.totalorder %s20, 0
    %p55 = por %p53, %p54
    %p56 = scmp.ne.s32.totalorder %s42, %s43
    %p57 = scmp.eq.s32.totalorder %s21, 1
    %p58 = por %p56, %p57
    %p60 = scmp.ne.s32.totalorder %s43, %s59
    %p61 = scmp.eq.s32.totalorder %s21, 0
    %p62 = por %p60, %p61
    %s63 = ssub.s32 %s22, %s34
    %s64 = ssub.s32 %s23, %s30
    %s65 = sor.u32 %s63, %s64
    %p66 = scmp.eq.s32.totalorder %s65, 0
    %s68 = sadd.s32 %s67, 1
    %s69 = scalar_select %p66, %s67, %s68
    %p72 = pneg %p66
    %p73 = scmp.eq.s32.totalorder %s15, 1
    %p74 = por %p72, %p73
    %p75 = scmp.ne.s32.totalorder %s67, %s70
    %p76 = scmp.eq.s32.totalorder %s15, 0
    %p77 = por %p75, %p76
    %p78 = scmp.ne.s32.totalorder %s67, %s70
    %p79 = scmp.eq.s32.totalorder %s20, 1
    %p80 = por %p78, %p79
    %p81 = scmp.ne.s32.totalorder %s70, %s71
    %p82 = scmp.eq.s32.totalorder %s20, 0
    %p83 = por %p81, %p82
    %p84 = scmp.ne.s32.totalorder %s70, %s71
    %p85 = scmp.eq.s32.totalorder %s21, 1
    %p86 = por %p84, %p85
    %p88 = scmp.ne.s32.totalorder %s71, %s87
    %p89 = scmp.eq.s32.totalorder %s21, 0
    %p90 = por %p88, %p89
    %s91 = ssub.s32 %s22, %s34
    %s92 = ssub.s32 %s23, %s30
    %s93 = sor.u32 %s91, %s92
    %p94 = scmp.eq.s32.totalorder %s93, 0
    %s96 = sadd.s32 %s95, 1
    %s97 = scalar_select %p94, %s95, %s96
    %p100 = pneg %p94
    %p101 = scmp.eq.s32.totalorder %s15, 1
    %p102 = por %p100, %p101
    %p103 = scmp.ne.s32.totalorder %s95, %s98
    %p104 = scmp.eq.s32.totalorder %s15, 0
    %p105 = por %p103, %p104
    %p106 = scmp.ne.s32.totalorder %s95, %s98
    %p107 = scmp.eq.s32.totalorder %s20, 1
    %p108 = por %p106, %p107
    %p109 = scmp.ne.s32.totalorder %s98, %s99
    %p110 = scmp.eq.s32.totalorder %s20, 0
    %p111 = por %p109, %p110
    %p112 = scmp.ne.s32.totalorder %s98, %s99
    %p113 = scmp.eq.s32.totalorder %s21, 1
    %p114 = por %p112, %p113
    %p116 = scmp.ne.s32.totalorder %s99, %s115
    %p117 = scmp.eq.s32.totalorder %s21, 0
    %p118 = por %p116, %p117
    %s120 = sadd.s32 %s119, 1
    %p123 = scmp.eq.s32.totalorder %s15, 1
    %p124 = scmp.ne.s32.totalorder %s119, %s121
    %p125 = scmp.eq.s32.totalorder %s15, 0
    %p126 = por %p124, %p125
    %p127 = scmp.ne.s32.totalorder %s119, %s121
    %p128 = scmp.eq.s32.totalorder %s20, 1
    %p129 = por %p127, %p128
    %p130 = scmp.ne.s32.totalorder %s121, %s122
    %p131 = scmp.eq.s32.totalorder %s20, 0
    %p132 = por %p130, %p131
    %p133 = scmp.ne.s32.totalorder %s121, %s122
    %p134 = scmp.eq.s32.totalorder %s21, 1
    %p135 = por %p133, %p134
    %p137 = scmp.ne.s32.totalorder %s122, %s136
    %p138 = scmp.eq.s32.totalorder %s21, 0
    %p139 = por %p137, %p138
    %s141 = sadd.s32 %s140, 1
    %p144 = scmp.eq.s32.totalorder %s15, 1
    %p145 = scmp.ne.s32.totalorder %s140, %s142
    %p146 = scmp.eq.s32.totalorder %s15, 0
    %p147 = por %p145, %p146
    %p148 = scmp.ne.s32.totalorder %s140, %s142
    %p149 = scmp.eq.s32.totalorder %s20, 1
    %p150 = por %p148, %p149
    %p151 = scmp.ne.s32.totalorder %s142, %s143
    %p152 = scmp.eq.s32.totalorder %s20, 0
    %p153 = por %p151, %p152
    %p154 = scmp.ne.s32.totalorder %s142, %s143
    %p155 = scmp.eq.s32.totalorder %s21, 1
    %p156 = por %p154, %p155
    %p158 = scmp.ne.s32.totalorder %s143, %s157
    %p159 = scmp.eq.s32.totalorder %s21, 0
    %p160 = por %p158, %p159
    %s162 = sadd.s32 %s161, 1
    %p165 = scmp.eq.s32.totalorder %s15, 1
    %p166 = scmp.ne.s32.totalorder %s161, %s163
    %p167 = scmp.eq.s32.totalorder %s15, 0
    %p168 = por %p166, %p167
    %p169 = scmp.ne.s32.totalorder %s161, %s163
    %p170 = scmp.eq.s32.totalorder %s20, 1
    %p171 = por %p169, %p170
    %p172 = scmp.ne.s32.totalorder %s163, %s164
    %p173 = scmp.eq.s32.totalorder %s20, 0
    %p174 = por %p172, %p173
    %p175 = scmp.ne.s32.totalorder %s163, %s164
    %p176 = scmp.eq.s32.totalorder %s21, 1
    %p177 = por %p175, %p176
    %p179 = scmp.ne.s32.totalorder %s164, %s178
    %p180 = scmp.eq.s32.totalorder %s21, 0
    %p181 = por %p179, %p180
    %s183 = sadd.s32 %s182, 1
    %p186 = scmp.eq.s32.totalorder %s15, 1
    %p187 = scmp.ne.s32.totalorder %s182, %s184
    %p188 = scmp.eq.s32.totalorder %s15, 0
    %p189 = por %p187, %p188
    %p190 = scmp.ne.s32.totalorder %s182, %s184
    %p191 = scmp.eq.s32.totalorder %s20, 1
    %p192 = por %p190, %p191
    %p193 = scmp.ne.s32.totalorder %s184, %s185
    %p194 = scmp.eq.s32.totalorder %s20, 0
    %p195 = por %p193, %p194
    %p196 = scmp.ne.s32.totalorder %s184, %s185
    %p197 = scmp.eq.s32.totalorder %s21, 1
    %p198 = por %p196, %p197
    %p200 = scmp.ne.s32.totalorder %s185, %s199
    %p201 = scmp.eq.s32.totalorder %s21, 0
    %p202 = por %p200, %p201
    %s203 = ssub.s32 %s22, %s34
    %s204 = ssub.s32 %s23, %s30
    %s205 = sor.u32 %s203, %s204
    %p206 = scmp.eq.s32.totalorder %s205, 0
    %s208 = sadd.s32 %s207, 1
    %s209 = scalar_select %p206, %s207, %s208
    %p212 = pneg %p206
    %p213 = scmp.eq.s32.totalorder %s15, 1
    %p214 = por %p212, %p213
    %p215 = scmp.ne.s32.totalorder %s207, %s210
    %p216 = scmp.eq.s32.totalorder %s15, 0
    %p217 = por %p215, %p216
    %p218 = scmp.ne.s32.totalorder %s207, %s210
    %p219 = scmp.eq.s32.totalorder %s20, 1
    %p220 = por %p218, %p219
    %p221 = scmp.ne.s32.totalorder %s210, %s211
    %p222 = scmp.eq.s32.totalorder %s20, 0
    %p223 = por %p221, %p222
    %p224 = scmp.ne.s32.totalorder %s210, %s211
    %p225 = scmp.eq.s32.totalorder %s21, 1
    %p226 = por %p224, %p225
    %p228 = scmp.ne.s32.totalorder %s211, %s227
    %p229 = scmp.eq.s32.totalorder %s21, 0
    %p230 = por %p228, %p229
    %p231 = scmp.le.s32.totalorder 1, %s15
    %p232 = scmp.lt.s32.totalorder %s15, 3
    %p233 = pnand %p231, %p232
    %p234 = pneg %p233
    // Predicated region
    $region9: #{tpu_custom_call.1} parent=5 // pred_check
      _
    $region10: #{tpu_custom_call.1} parent=5 // pred_check_branch
      %236 = sbr.rel (%p233) target = $region12
    $region11: #{tpu_custom_call.1} parent=5 // pred_region
      %s237 = ssub.s32 %s15, 1
      // Predicated region
      $region13: #{tpu_custom_call.1} parent=11 // pred_check
        %p238 = pneg %p132
      $region14: #{tpu_custom_call.1} parent=11 // pred_check_branch
        %240 = sbr.rel (%p238) target = $region16
      $region15: #{tpu_custom_call.1} parent=11 // pred_region
        _
      $region16: #{tpu_custom_call.1} parent=11 // pred_fallthru
        _
      // Predicated region
      $region17: #{tpu_custom_call.1} parent=11 // pred_check
        %p241 = pneg %p153
      $region18: #{tpu_custom_call.1} parent=11 // pred_check_branch
        %243 = sbr.rel (%p241) target = $region20
      $region19: #{tpu_custom_call.1} parent=11 // pred_region
        _
      $region20: #{tpu_custom_call.1} parent=11 // pred_fallthru
        _
      // Predicated region
      $region21: #{tpu_custom_call.1} parent=11 // pred_check
        %p244 = pneg %p174
      $region22: #{tpu_custom_call.1} parent=11 // pred_check_branch
        %246 = sbr.rel (%p244) target = $region24
      $region23: #{tpu_custom_call.1} parent=11 // pred_region
        _
      $region24: #{tpu_custom_call.1} parent=11 // pred_fallthru
        _
      // Predicated region
      $region25: #{tpu_custom_call.1} parent=11 // pred_check
        %p247 = pneg %p195
      $region26: #{tpu_custom_call.1} parent=11 // pred_check_branch
        %249 = sbr.rel (%p247) target = $region28
      $region27: #{tpu_custom_call.1} parent=11 // pred_region
        _
      $region28: #{tpu_custom_call.1} parent=11 // pred_fallthru
        _
    $region12: #{tpu_custom_call.1} parent=5 // pred_fallthru
      _
    %p250 = scmp.lt.s32.totalorder %s15, 2
    // Predicated region
    $region29: #{tpu_custom_call.1} parent=5 // pred_check
      %p251 = pneg %p250
    $region30: #{tpu_custom_call.1} parent=5 // pred_check_branch
      %253 = sbr.rel (%p251) target = $region32
    $region31: #{tpu_custom_call.1} parent=5 // pred_region
      // Predicated region
      $region33: #{tpu_custom_call.1} parent=31 // pred_check
        %p254 = pneg %p49
      $region34: #{tpu_custom_call.1} parent=31 // pred_check_branch
        %256 = sbr.rel (%p254) target = $region36
      $region35: #{tpu_custom_call.1} parent=31 // pred_region
        %p257 = scmp.lt.s32.totalorder %s22, 1
        %s258 = scalar_select %p257, %s22, 1
        %p259 = scmp.lt.s32.totalorder %s23, 0
        %s260 = scalar_select %p259, %s23, 0
        %s261 = sadd.s32 %s260, %s258
        %s262 = smul.addr %s261, 8
        %s263 = scalar_lea.vmem %s1, %s262
      $region36: #{tpu_custom_call.1} parent=31 // pred_fallthru
        _
      // Predicated region
      $region37: #{tpu_custom_call.1} parent=31 // pred_check
        %p264 = pneg %p77
      $region38: #{tpu_custom_call.1} parent=31 // pred_check_branch
        %266 = sbr.rel (%p264) target = $region40
      $region39: #{tpu_custom_call.1} parent=31 // pred_region
        %p267 = scmp.lt.s32.totalorder %s22, 1
        %s268 = scalar_select %p267, %s22, 1
        %p269 = scmp.lt.s32.totalorder %s23, 0
        %s270 = scalar_select %p269, %s23, 0
        %s271 = smul.addr %s268, 2
        %s272 = sadd.s32 %s270, %s271
        %s273 = smul.addr %s272, 8
        %s274 = scalar_lea.vmem %s2, %s273
      $region40: #{tpu_custom_call.1} parent=31 // pred_fallthru
        _
      // Predicated region
      $region41: #{tpu_custom_call.1} parent=31 // pred_check
        %p275 = pneg %p105
      $region42: #{tpu_custom_call.1} parent=31 // pred_check_branch
        %277 = sbr.rel (%p275) target = $region44
      $region43: #{tpu_custom_call.1} parent=31 // pred_region
        %p278 = scmp.lt.s32.totalorder %s22, 1
        %s279 = scalar_select %p278, %s22, 1
        %p280 = scmp.lt.s32.totalorder %s23, 0
        %s281 = scalar_select %p280, %s23, 0
        %s282 = smul.addr %s279, 4
        %s283 = sadd.s32 %s281, %s282
        %s284 = smul.addr %s283, 8
        %s285 = scalar_lea.vmem %s3, %s284
      $region44: #{tpu_custom_call.1} parent=31 // pred_fallthru
        _
    $region32: #{tpu_custom_call.1} parent=5 // pred_fallthru
      _
    %p286 = scmp.le.s32.totalorder 1, %s15
    %p287 = scmp.lt.s32.totalorder %s15, 3
    %p288 = pnand %p286, %p287
    %p289 = pneg %p288
    // Predicated region
    $region45: #{tpu_custom_call.1} parent=5 // pred_check
      _
    $region46: #{tpu_custom_call.1} parent=5 // pred_check_branch
      %291 = sbr.rel (%p288) target = $region48
    $region47: #{tpu_custom_call.1} parent=5 // pred_region
      %s292 = ssub.s32 %s15, 1
      %p293 = scmp.lt.s32.totalorder %s24, 1
      %s294 = scalar_select %p293, %s24, 1
      %p295 = scmp.lt.s32.totalorder %s25, 0
      %s296 = scalar_select %p295, %s25, 0
      %s297 = sadd.s32 %s296, %s294
      %s298 = smul.addr %s297, 8
      %s299 = scalar_lea.vmem %s1, %s298
      %p300 = pneg %p55
      %p301 = pneg %p52
      %p302 = scmp.lt.s32.totalorder %s24, 1
      %s303 = scalar_select %p302, %s24, 1
      %p304 = scmp.lt.s32.totalorder %s25, 0
      %s305 = scalar_select %p304, %s25, 0
      %s306 = smul.addr %s303, 2
      %s307 = sadd.s32 %s305, %s306
      %s308 = smul.addr %s307, 8
      %s309 = scalar_lea.vmem %s2, %s308
      %p310 = pneg %p83
      %p311 = pneg %p80
      %p312 = scmp.lt.s32.totalorder %s24, 1
      %s313 = scalar_select %p312, %s24, 1
      %p314 = scmp.lt.s32.totalorder %s25, 0
      %s315 = scalar_select %p314, %s25, 0
      %s316 = smul.addr %s313, 4
      %s317 = sadd.s32 %s315, %s316
      %s318 = smul.addr %s317, 8
      %s319 = scalar_lea.vmem %s3, %s318
      %p320 = pneg %p111
      %p321 = pneg %p108
      %p322 = pneg %p132
      %p323 = pneg %p129
      %p324 = pneg %p153
      %p325 = pneg %p150
      %p326 = pneg %p174
      %p327 = pneg %p171
      %p328 = pneg %p195
      %p329 = pneg %p192
      %p330 = pneg %p223
      %p331 = pneg %p220
      %p332 = scmp.lt.s32.totalorder %s24, 1
      %s333 = scalar_select %p332, %s24, 1
      %p334 = scmp.lt.s32.totalorder %s25, 0
      %s335 = scalar_select %p334, %s25, 0
      %s336 = smul.addr %s333, 4
      %s337 = sadd.s32 %s335, %s336
      %s338 = smul.addr %s337, 8
      %s339 = scalar_lea.vmem %s8, %s338
      %p340 = scmp.lt.s32.totalorder %s24, 1
      %s341 = scalar_select %p340, %s24, 1
      %p342 = scmp.lt.s32.totalorder %s25, 0
      %s343 = scalar_select %p342, %s25, 0
      %s344 = sadd.s32 %s343, %s341
      %s345 = smul.addr %s344, 8
      %s346 = scalar_lea.vmem %s1, %s345
      %p347 = scmp.lt.s32.totalorder %s24, 1
      %s348 = scalar_select %p347, %s24, 1
      %p349 = scmp.lt.s32.totalorder %s25, 0
      %s350 = scalar_select %p349, %s25, 0
      %s351 = smul.addr %s348, 2
      %s352 = sadd.s32 %s350, %s351
      %s353 = smul.addr %s352, 8
      %s354 = scalar_lea.vmem %s2, %s353
      %p355 = scmp.lt.s32.totalorder %s24, 1
      %s356 = scalar_select %p355, %s24, 1
      %p357 = scmp.lt.s32.totalorder %s25, 0
      %s358 = scalar_select %p357, %s25, 0
      %s359 = smul.addr %s356, 4
      %s360 = sadd.s32 %s358, %s359
      %s361 = smul.addr %s360, 8
      %s362 = scalar_lea.vmem %s3, %s361
      %p363 = scmp.lt.s32.totalorder %s24, 1
      %s364 = scalar_select %p363, %s24, 1
      %p365 = scmp.lt.s32.totalorder %s25, 0
      %s366 = scalar_select %p365, %s25, 0
      %s367 = smul.addr %s364, 4
      %s368 = sadd.s32 %s366, %s367
      %s369 = smul.addr %s368, 8
      %s370 = scalar_lea.vmem %s8, %s369
      %v371 = vld [vmem:[%s4] sm:$0xff]
      %v372 = vld [vmem:[%s4 + $0x8] sm:$0xff]
      %v373 = vld [vmem:[%s4 + $0x10] sm:$0xff]
      %v374 = vld [vmem:[%s4 + $0x18] sm:$0xff]
      %v375 = vld [vmem:[%s346] sm:$0xff]
      %v376 = vld [vmem:[%s5] sm:$0xff]
      %v377 = vld [vmem:[%s5 + $0x8] sm:$0xff]
      %v378 = vld [vmem:[%s5 + $0x10] sm:$0xff]
      %v379 = vld [vmem:[%s5 + $0x18] sm:$0xff]
      %381 = vset.pattern.permute.xlu0 0
      %382 = vperm.xlu0 %381, %v376
      %v383 = vpop.permute.xlu0 %382
      %386 = vset.pattern.permute.xlu0 0
      %387 = vperm.xlu0 %386, %v377
      %v388 = vpop.permute.xlu0 %387
      %391 = vset.pattern.permute.xlu0 0
      %392 = vperm.xlu0 %391, %v378
      %v393 = vpop.permute.xlu0 %392
      %396 = vset.pattern.permute.xlu0 0
      %397 = vperm.xlu0 %396, %v379
      %v398 = vpop.permute.xlu0 %397
      %vm400 = vcmask 64512
      %v402 = vsel %vm400, %v371, 0
      %v405 = vsel %vm400, %v372, 0
      %v408 = vsel %vm400, %v373, 0
      %v411 = vsel %vm400, %v374, 0
      %413 = vmatprep.subr.mxu0 0.0
      %414 = vmatpush1.msra.mxu0 0.0
      %415 = vmatprep.subr.mxu0 0.0
      %416 = vmatpush1.msra.mxu0 0.0
      %417 = vmatprep.subr.mxu0 0.0
      %418 = vmatpush1.msra.mxu0 0.0
      %419 = vmatprep.subr.mxu0 0.0
      %420 = vmatpush1.msra.mxu0 0.0
      %421 = vmatprep.subr.mxu0 0.0
      %422 = vmatpush1.msra.mxu0 0.0
      %423 = vmatprep.subr.mxu0 0.0
      %424 = vmatpush1.msra.mxu0 0.0
      %425 = vmatprep.subr.mxu0 0.0
      %426 = vmatpush1.msra.mxu0 0.0
      %427 = vmatprep.subr.mxu0 0.0
      %428 = vmatpush1.msra.mxu0 0.0
      %429 = vmatprep.subr.mxu0 0.0
      %430 = vmatpush1.msra.mxu0 0.0
      %431 = vmatprep.subr.mxu0 0.0
      %432 = vmatpush1.msra.mxu0 0.0
      %433 = vmatprep.subr.mxu0 0.0
      %434 = vmatpush1.msra.mxu0 0.0
      %435 = vmatprep.subr.mxu0 0.0
      %436 = vmatpush1.msra.mxu0 0.0
      %437 = vmatprep.subr.mxu0 0.0
      %438 = vmatpush1.msra.mxu0 0.0
      %439 = vmatprep.subr.mxu0 0.0
      %440 = vmatpush1.msra.mxu0 0.0
      %441 = vmatprep.subr.mxu0 0.0
      %442 = vmatpush1.msra.mxu0 0.0
      %443 = vmatprep.subr.mxu0 0.0
      %444 = vmatpush1.msra.mxu0 %v375
      %445 = vmatprep.subr.mxu0 0.0
      %446 = vmatpush2.msra.mxu0 0.0
      %447 = vmatprep.subr.mxu0 0.0
      %448 = vmatpush2.msra.mxu0 0.0
      %449 = vmatprep.subr.mxu0 0.0
      %450 = vmatpush2.msra.mxu0 0.0
      %451 = vmatprep.subr.mxu0 0.0
      %452 = vmatpush2.msra.mxu0 0.0
      %453 = vmatprep.subr.mxu0 0.0
      %454 = vmatpush2.msra.mxu0 0.0
      %455 = vmatprep.subr.mxu0 0.0
      %456 = vmatpush2.msra.mxu0 0.0
      %457 = vmatprep.subr.mxu0 0.0
      %458 = vmatpush2.msra.mxu0 0.0
      %459 = vmatprep.subr.mxu0 0.0
      %460 = vmatpush2.msra.mxu0 0.0
      %461 = vmatprep.subr.mxu0 0.0
      %462 = vmatpush2.msra.mxu0 0.0
      %463 = vmatprep.subr.mxu0 0.0
      %464 = vmatpush2.msra.mxu0 0.0
      %465 = vmatprep.subr.mxu0 0.0
      %466 = vmatpush2.msra.mxu0 0.0
      %467 = vmatprep.subr.mxu0 0.0
      %468 = vmatpush2.msra.mxu0 0.0
      %469 = vmatprep.subr.mxu0 0.0
      %470 = vmatpush2.msra.mxu0 0.0
      %471 = vmatprep.subr.mxu0 0.0
      %472 = vmatpush2.msra.mxu0 0.0
      %473 = vmatprep.subr.mxu0 0.0
      %474 = vmatpush2.msra.mxu0 0.0
      %475 = vmatprep.subr.mxu0 0.0
      %476 = vmatpush2.msra.mxu0 0.0
      %477 = vmatprep.mubr.f32.mxu0 0.0
      %478 = vmatmul.mubr.f32.gmra.mxu0 %v402
      %v479 = vpop.f32.mrf.mxu0
      %v480 = vadd.f32 %v383, %v479
      %v481 = vpop.f32.mrf.mxu0
      %482 = vmatprep.mubr.f32.mxu0 0.0
      %483 = vmatmul.mubr.f32.gmra.mxu0 %v405
      %v484 = vpop.f32.mrf.mxu0
      %v485 = vadd.f32 %v388, %v484
      %v486 = vpop.f32.mrf.mxu0
      %487 = vmatprep.mubr.f32.mxu0 0.0
      %488 = vmatmul.mubr.f32.gmra.mxu0 %v408
      %v489 = vpop.f32.mrf.mxu0
      %v490 = vadd.f32 %v393, %v489
      %v491 = vpop.f32.mrf.mxu0
      %492 = vmatprep.mubr.f32.mxu0 0.0
      %493 = vmatmul.mubr.f32.gmra.mxu0 %v411
      %v494 = vpop.f32.mrf.mxu0
      %v495 = vadd.f32 %v398, %v494
      %v496 = vpop.f32.mrf.mxu0
      %497 = vdwg.mxu0
      %v498 = vmax.f32 %v480, 0.0
      %v499 = vmax.f32 %v485, 0.0
      %v500 = vmax.f32 %v490, 0.0
      %v501 = vmax.f32 %v495, 0.0
      %v502 = vld [vmem:[%s6] sm:$0xff]
      %v503 = vld [vmem:[%s6 + $0x8] sm:$0xff]
      %v504 = vld [vmem:[%s6 + $0x10] sm:$0xff]
      %v505 = vld [vmem:[%s6 + $0x18] sm:$0xff]
      %v506 = vld [vmem:[%s354] sm:$0xff]
      %v507 = vld [vmem:[%s354 + $0x8] sm:$0xff]
      %v508 = vld [vmem:[%s7] sm:$0xff]
      %v509 = vld [vmem:[%s7 + $0x8] sm:$0xff]
      %v510 = vld [vmem:[%s7 + $0x10] sm:$0xff]
      %v511 = vld [vmem:[%s7 + $0x18] sm:$0xff]
      %513 = vset.pattern.permute.xlu0 0
      %514 = vperm.xlu0 %513, %v508
      %v515 = vpop.permute.xlu0 %514
      %518 = vset.pattern.permute.xlu0 0
      %519 = vperm.xlu0 %518, %v509
      %v520 = vpop.permute.xlu0 %519
      %523 = vset.pattern.permute.xlu0 0
      %524 = vperm.xlu0 %523, %v510
      %v525 = vpop.permute.xlu0 %524
      %528 = vset.pattern.permute.xlu0 0
      %529 = vperm.xlu0 %528, %v511
      %v530 = vpop.permute.xlu0 %529
      %vm532 = vcmask 130048
      %v534 = vsel %vm532, %v502, 0
      %v537 = vsel %vm532, %v503, 0
      %v540 = vsel %vm532, %v504, 0
      %v543 = vsel %vm532, %v505, 0
      %545 = vmatprep.subr.mxu0 0.0
      %546 = vmatpush1.msra.mxu0 0.0
      %547 = vmatprep.subr.mxu0 0.0
      %548 = vmatpush1.msra.mxu0 0.0
      %549 = vmatprep.subr.mxu0 0.0
      %550 = vmatpush1.msra.mxu0 0.0
      %551 = vmatprep.subr.mxu0 0.0
      %552 = vmatpush1.msra.mxu0 0.0
      %553 = vmatprep.subr.mxu0 0.0
      %554 = vmatpush1.msra.mxu0 0.0
      %555 = vmatprep.subr.mxu0 0.0
      %556 = vmatpush1.msra.mxu0 0.0
      %557 = vmatprep.subr.mxu0 0.0
      %558 = vmatpush1.msra.mxu0 0.0
      %559 = vmatprep.subr.mxu0 0.0
      %560 = vmatpush1.msra.mxu0 0.0
      %561 = vmatprep.subr.mxu0 0.0
      %562 = vmatpush1.msra.mxu0 0.0
      %563 = vmatprep.subr.mxu0 0.0
      %564 = vmatpush1.msra.mxu0 0.0
      %565 = vmatprep.subr.mxu0 0.0
      %566 = vmatpush1.msra.mxu0 0.0
      %567 = vmatprep.subr.mxu0 0.0
      %568 = vmatpush1.msra.mxu0 0.0
      %569 = vmatprep.subr.mxu0 0.0
      %570 = vmatpush1.msra.mxu0 0.0
      %571 = vmatprep.subr.mxu0 0.0
      %572 = vmatpush1.msra.mxu0 0.0
      %573 = vmatprep.subr.mxu0 0.0
      %574 = vmatpush1.msra.mxu0 %v507
      %575 = vmatprep.subr.mxu0 0.0
      %576 = vmatpush1.msra.mxu0 %v506
      %577 = vmatprep.subr.mxu0 0.0
      %578 = vmatpush2.msra.mxu0 0.0
      %579 = vmatprep.subr.mxu0 0.0
      %580 = vmatpush2.msra.mxu0 0.0
      %581 = vmatprep.subr.mxu0 0.0
      %582 = vmatpush2.msra.mxu0 0.0
      %583 = vmatprep.subr.mxu0 0.0
      %584 = vmatpush2.msra.mxu0 0.0
      %585 = vmatprep.subr.mxu0 0.0
      %586 = vmatpush2.msra.mxu0 0.0
      %587 = vmatprep.subr.mxu0 0.0
      %588 = vmatpush2.msra.mxu0 0.0
      %589 = vmatprep.subr.mxu0 0.0
      %590 = vmatpush2.msra.mxu0 0.0
      %591 = vmatprep.subr.mxu0 0.0
      %592 = vmatpush2.msra.mxu0 0.0
      %593 = vmatprep.subr.mxu0 0.0
      %594 = vmatpush2.msra.mxu0 0.0
      %595 = vmatprep.subr.mxu0 0.0
      %596 = vmatpush2.msra.mxu0 0.0
      %597 = vmatprep.subr.mxu0 0.0
      %598 = vmatpush2.msra.mxu0 0.0
      %599 = vmatprep.subr.mxu0 0.0
      %600 = vmatpush2.msra.mxu0 0.0
      %601 = vmatprep.subr.mxu0 0.0
      %602 = vmatpush2.msra.mxu0 0.0
      %603 = vmatprep.subr.mxu0 0.0
      %604 = vmatpush2.msra.mxu0 0.0
      %605 = vmatprep.subr.mxu0 0.0
      %606 = vmatpush2.msra.mxu0 0.0
      %607 = vmatprep.subr.mxu0 0.0
      %608 = vmatpush2.msra.mxu0 0.0
      %609 = vmatprep.mubr.f32.mxu0 0.0
      %610 = vmatmul.mubr.f32.gmra.mxu0 %v534
      %v611 = vpop.f32.mrf.mxu0
      %v612 = vadd.f32 %v515, %v611
      %v613 = vpop.f32.mrf.mxu0
      %614 = vmatprep.mubr.f32.mxu0 0.0
      %615 = vmatmul.mubr.f32.gmra.mxu0 %v537
      %v616 = vpop.f32.mrf.mxu0
      %v617 = vadd.f32 %v520, %v616
      %v618 = vpop.f32.mrf.mxu0
      %619 = vmatprep.mubr.f32.mxu0 0.0
      %620 = vmatmul.mubr.f32.gmra.mxu0 %v540
      %v621 = vpop.f32.mrf.mxu0
      %v622 = vadd.f32 %v525, %v621
      %v623 = vpop.f32.mrf.mxu0
      %624 = vmatprep.mubr.f32.mxu0 0.0
      %625 = vmatmul.mubr.f32.gmra.mxu0 %v543
      %v626 = vpop.f32.mrf.mxu0
      %v627 = vadd.f32 %v530, %v626
      %v628 = vpop.f32.mrf.mxu0
      %629 = vdwg.mxu0
      %v630 = vmax.f32 %v612, 0.0
      %v631 = vmax.f32 %v617, 0.0
      %v632 = vmax.f32 %v622, 0.0
      %v633 = vmax.f32 %v627, 0.0
      %v634 = vld [vmem:[%s362] sm:$0xff]
      %v635 = vld [vmem:[%s362 + $0x8] sm:$0xff]
      %v636 = vld [vmem:[%s362 + $0x10] sm:$0xff]
      %v637 = vld [vmem:[%s362 + $0x18] sm:$0xff]
      %s638 = sld [smem:[#allocation3]]
      %v639 = vstv %s638
      %v640 = vmul.f32 %v634, %v639
      %v641 = vmul.f32 %v635, %v639
      %v642 = vmul.f32 %v636, %v639
      %v643 = vmul.f32 %v637, %v639
      %v644 = vadd.f32 %v498, %v630
      %v645 = vadd.f32 %v499, %v631
      %v646 = vadd.f32 %v500, %v632
      %v647 = vadd.f32 %v501, %v633
      %v648 = vadd.f32 %v644, %v640
      %v649 = vadd.f32 %v645, %v641
      %v650 = vadd.f32 %v646, %v642
      %v651 = vadd.f32 %v647, %v643
      %652 = vst.msk [vmem:[%s370] sm:$0xff] %vm532, %v648
      %653 = vst.msk [vmem:[%s370 + $0x8] sm:$0xff] %vm532, %v649
      %654 = vst.msk [vmem:[%s370 + $0x10] sm:$0xff] %vm532, %v650
      %655 = vst.msk [vmem:[%s370 + $0x18] sm:$0xff] %vm532, %v651
      %p656 = scmp.lt.s32.totalorder %s24, 1
      %s657 = scalar_select %p656, %s24, 1
      %p658 = scmp.lt.s32.totalorder %s25, 0
      %s659 = scalar_select %p658, %s25, 0
      %s660 = smul.addr %s657, 4
      %s661 = sadd.s32 %s659, %s660
      %s662 = smul.addr %s661, 8
      %s663 = scalar_lea.vmem %s8, %s662
      // Predicated region
      $region49: #{tpu_custom_call.1} parent=47 // pred_check
        %p664 = pneg %p220
      $region50: #{tpu_custom_call.1} parent=47 // pred_check_branch
        %666 = sbr.rel (%p664) target = $region52
      $region51: #{tpu_custom_call.1} parent=47 // pred_region
        _
      $region52: #{tpu_custom_call.1} parent=47 // pred_fallthru
        _
    $region48: #{tpu_custom_call.1} parent=5 // pred_fallthru
      _
    %p667 = scmp.le.s32.totalorder 2, %s15
    // Predicated region
    $region53: #{tpu_custom_call.1} parent=5 // pred_check
      %p668 = pneg %p667
    $region54: #{tpu_custom_call.1} parent=5 // pred_check_branch
      %670 = sbr.rel (%p668) target = $region56
    $region55: #{tpu_custom_call.1} parent=5 // pred_region
      %s671 = ssub.s32 %s15, 2
      // Predicated region
      $region57: #{tpu_custom_call.1} parent=55 // pred_check
        %p672 = pneg %p226
      $region58: #{tpu_custom_call.1} parent=55 // pred_check_branch
        %674 = sbr.rel (%p672) target = $region60
      $region59: #{tpu_custom_call.1} parent=55 // pred_region
        %p675 = scmp.lt.s32.totalorder %s26, 1
        %s676 = scalar_select %p675, %s26, 1
        %p677 = scmp.lt.s32.totalorder %s27, 0
        %s678 = scalar_select %p677, %s27, 0
        %s679 = smul.addr %s676, 4
        %s680 = sadd.s32 %s678, %s679
        %s681 = smul.addr %s680, 8
        %s682 = scalar_lea.vmem %s8, %s681
      $region60: #{tpu_custom_call.1} parent=55 // pred_fallthru
        _
    $region56: #{tpu_custom_call.1} parent=5 // pred_fallthru
      _
  $region6: #{tpu_custom_call.1} parent=0 // loop_footer
    %s19 = sadd.s32 1, %s15
  $region7: #{tpu_custom_call.1} parent=0 // loop_footer_branch
    %14 = sbr.rel target = $region3
  $region8: #{tpu_custom_call.1} parent=0 // loop_exit
    _

</llo_original>
